<compile_context>
chip_gen: v6e
topology: v6e:2x2x1
jax: 0.10.0
libtpu: 0.0.40
codegen_flags: <defaults>
</compile_context>

<pallas_src>
import jax
import jax.numpy as jnp
from jax.experimental import pallas as pl
from jax.experimental.pallas import tpu as pltpu


_COLS_CANDIDATES = (1024, 512, 256, 128)
_RAGGED_COLS = 512
_MIN_SPLIT_BYTES = 1 << 20            # above this, never run a 1-step grid
_SMALL_FALLBACK_BYTES = 256 * 1024    # below this, plain x * scale is faster


def _sublane_pack(itemsize: int) -> int:
    # Sub-32-bit dtypes pack rows along sublanes; keep tile rows a multiple of
    # the packed granularity so stores stay unmasked.
    return {4: 8, 2: 16, 1: 32}.get(itemsize, 8)


def _tile_budget():
    """(target block bytes, vmem_limit_bytes) - slightly larger blocks on v7x."""
    kind = ""
    try:
        kind = jax.devices()[0].device_kind.lower()
    except Exception:
        pass
    if "v7" in kind or "7x" in kind:
        # v7x: ~3.2 TB/s HBM hides per-step overhead over more bytes; 64 MiB phys VMEM.
        return 6 * 1024 * 1024, 40 * 1024 * 1024
    return 4 * 1024 * 1024, 32 * 1024 * 1024


def _scale_is_float(scale) -> bool:
    if isinstance(scale, bool):
        return False
    if isinstance(scale, float):
        return True
    if isinstance(scale, int):
        return False
    try:
        return jnp.issubdtype(jnp.asarray(scale).dtype, jnp.floating)
    except Exception:
        return False


def _result_dtype(x_dtype, scale):
    # Mirror PyTorch promotion for `tensor * python_scalar`:
    #   float tensor * (float|int) scalar -> tensor dtype
    #   int/bool tensor * float scalar    -> float32
    #   int tensor * int scalar           -> tensor dtype
    x_dtype = jnp.dtype(x_dtype)
    if _scale_is_float(scale):
        if not jnp.issubdtype(x_dtype, jnp.floating):
            return jnp.dtype(jnp.float32)
        return x_dtype
    if x_dtype == jnp.bool_:
        # TODO(synk): PyTorch promotes bool * int scalar to int64; JAX default config disallows int64.
        return jnp.dtype(jnp.int32)
    return x_dtype


def _compute_dtype(out_dtype):
    # Compute low-precision floats in f32 (closer to PyTorch's promoted compute),
    # cast on store. Integer paths compute in the integer dtype.
    out_dtype = jnp.dtype(out_dtype)
    if jnp.issubdtype(out_dtype, jnp.floating):
        return jnp.promote_types(out_dtype, jnp.float32)
    return out_dtype


def _make_scale_kernel(scale, compute_dtype):
    def _kernel(x_ref, o_ref):
        # Dtype promotion + constant-scale multiply fused on the VPU; DMA is the
        # limiter, so the extra cast is free.
        x = x_ref[...].astype(compute_dtype)
        o_ref[...] = (x * jnp.asarray(scale, dtype=compute_dtype)).astype(o_ref.dtype)
    return _kernel


def _scale_2d(x2d: jax.Array, scale, out_dtype, compute_dtype, donate: bool) -> jax.Array:
    rows, cols = x2d.shape
    in_dt = jnp.dtype(x2d.dtype)
    out_dt = jnp.dtype(out_dtype)
    itemsize = max(in_dt.itemsize, out_dt.itemsize)
    sub = max(_sublane_pack(in_dt.itemsize), _sublane_pack(out_dt.itemsize))

    target_bytes, vmem_limit = _tile_budget()

    # Largest row-tile (multiple of the sublane pack) near the per-block budget.
    tile_r = max(sub, (target_bytes // (cols * itemsize) // sub) * sub)

    if tile_r >= rows:
        total_bytes = rows * cols * itemsize
        if total_bytes > _MIN_SPLIT_BYTES and rows >= 2 * sub:
            # Keep >=2 (ideally 4, an even count) grid steps: preserves in/out
            # DMA overlap and lets v7x shard the row axis across both TCs.
            n_steps = 4 if rows >= 4 * sub else 2
            tile_r = max(sub, (pl.cdiv(rows, n_steps) // sub) * sub)
        else:
            tile_r = rows  # full first dim: no (8,128) divisibility requirement
    grid = (pl.cdiv(rows, tile_r),)  # Pallas masks the partial last block

    n = rows * cols
    aliases = {0: 0} if (donate and in_dt == out_dt) else {}

    return pl.pallas_call(
        _make_scale_kernel(scale, compute_dtype),
        out_shape=jax.ShapeDtypeStruct((rows, cols), out_dt),
        grid=grid,
        in_specs=[pl.BlockSpec((tile_r, cols), lambda i: (i, 0))],
        out_specs=pl.BlockSpec((tile_r, cols), lambda i: (i, 0)),
        compiler_params=pltpu.CompilerParams(
            dimension_semantics=("parallel",),  # allows 2-TC sharding on v7x
            vmem_limit_bytes=vmem_limit,
        ),
        cost_estimate=pl.CostEstimate(
            flops=n, transcendentals=0,
            bytes_accessed=n * (in_dt.itemsize + out_dt.itemsize)),
        input_output_aliases=aliases,
    )(x2d)


def scale_pallas(x: jax.Array, scale, *, donate: bool = False,
                 small_fallback_bytes: int = _SMALL_FALLBACK_BYTES) -> jax.Array:
    """Elementwise x * scale with a Pallas TPU kernel. Arbitrary-rank x."""
    orig_shape = x.shape
    out_dtype = _result_dtype(x.dtype, scale)
    compute_dtype = _compute_dtype(out_dtype)

    n = x.size
    if n == 0:
        return x.astype(out_dtype)

    # Tiny tensors: kernel launch/pipeline-setup overhead dominates -> plain XLA.
    max_item = max(jnp.dtype(x.dtype).itemsize, jnp.dtype(out_dtype).itemsize)
    if n * max_item < small_fallback_bytes:
        return (x.astype(compute_dtype)
                * jnp.asarray(scale, compute_dtype)).astype(out_dtype).reshape(orig_shape)

    flat = x.reshape(-1)

    # Fast path: lane-dense reshape with no padding (common NCHW / flat cases).
    for cols in _COLS_CANDIDATES:
        if n % cols == 0:
            out2d = _scale_2d(flat.reshape(n // cols, cols), scale,
                              out_dtype, compute_dtype, donate)
            return out2d.reshape(orig_shape)

    # Ragged path: Pallas on the aligned prefix, plain JAX on the short tail.
    cols = _RAGGED_COLS
    n_aligned = (n // cols) * cols
    if n_aligned == 0:
        return (x.astype(compute_dtype)
                * jnp.asarray(scale, compute_dtype)).astype(out_dtype).reshape(orig_shape)
    prefix = _scale_2d(flat[:n_aligned].reshape(n_aligned // cols, cols),
                       scale, out_dtype, compute_dtype, donate=False)
    tail = (flat[n_aligned:].astype(compute_dtype)
            * jnp.asarray(scale, compute_dtype)).astype(out_dtype)
    out = jnp.concatenate([prefix.reshape(-1), tail])
    return out.reshape(orig_shape)


if __name__ == "__main__":
    key = jax.random.PRNGKey(0)
    k0, k1, k2, k3 = jax.random.split(key, 4)
    scale = 0.5  # the module's constructor arg

    # 1) Aligned NCHW-style f32 input, forced through the Pallas kernel.
    x = jax.random.normal(k0, (2, 4, 16, 16), dtype=jnp.float32)
    y = jax.block_until_ready(scale_pallas(x, scale, small_fallback_bytes=0))
    y_ref = x * scale
    assert y.shape == x.shape and y.dtype == y_ref.dtype
    assert jnp.allclose(y, y_ref, atol=1e-6, rtol=1e-6)

    # 2) Integer tensor * float scalar: promotion cast fused into the kernel.
    xi = jax.random.randint(k1, (2, 4, 16, 16), -8, 8, dtype=jnp.int32)
    yi = jax.block_until_ready(scale_pallas(xi, scale, small_fallback_bytes=0))
    assert yi.dtype == jnp.float32
    assert jnp.allclose(yi, xi.astype(jnp.float32) * scale, atol=1e-6, rtol=1e-6)

    # 3) Ragged (non-128-divisible) shape: aligned prefix via Pallas + JAX tail.
    xr = jax.random.normal(k2, (63, 129), dtype=jnp.float32)
    yr = jax.block_until_ready(scale_pallas(xr, 0.25, small_fallback_bytes=0))
    assert yr.shape == xr.shape
    assert jnp.allclose(yr, xr * 0.25, atol=1e-6, rtol=1e-6)

    # 4) Default path: tiny tensor takes the plain-JAX fallback (no kernel launch).
    xs = jax.random.normal(k3, (8, 32), dtype=jnp.float32)
    ys = jax.block_until_ready(scale_pallas(xs, scale))
    assert jnp.allclose(ys, xs * scale, atol=1e-6, rtol=1e-6)

    print("KERNEL_OK")
</pallas_src>

<mosaic_0001>
module attributes {stable_mosaic.version = 11 : i64} {
  func.func @_kernel(%arg0: i32, %arg1: memref<2x1024xf32, #tpu.memory_space<vmem>>, %arg2: memref<2x1024xf32, #tpu.memory_space<vmem>>) attributes {dimension_semantics = [#tpu.dimension_semantics<parallel>], iteration_bounds = array<i64: 1>, scalar_prefetch = 0 : i64, scratch_operands = 0 : i64, tpu.core_type = #tpu.core_type<tc>, window_params = [{transform_indices = @transform_0, window_bounds = array<i64: 2, 1024>}, {transform_indices = @transform_1, window_bounds = array<i64: 2, 1024>}]} {
    %c0 = arith.constant 0 : index
    %c0_0 = arith.constant 0 : index
    %0 = vector.load %arg1[%c0, %c0_0] : memref<2x1024xf32, #tpu.memory_space<vmem>>, vector<2x1024xf32>
    %cst = arith.constant 5.000000e-01 : f32
    %1 = vector.broadcast %cst : f32 to vector<2x1024xf32>
    %2 = arith.mulf %0, %1 : vector<2x1024xf32>
    %c0_1 = arith.constant 0 : index
    %c0_2 = arith.constant 0 : index
    %3 = vector.load %arg2[%c0_1, %c0_2] : memref<2x1024xf32, #tpu.memory_space<vmem>>, vector<2x1024xf32>
    tpu.vector_store %arg2[%c0_1, %c0_2], %2 {strides = array<i32>} : memref<2x1024xf32, #tpu.memory_space<vmem>>, vector<2x1024xf32>,
    return
  }
  func.func @transform_0(%arg0: i32) -> (i32, i32) {
    %c0_i32 = arith.constant 0 : i32
    %c0_i32_0 = arith.constant 0 : i32
    return %arg0, %c0_i32 : i32, i32
  }
  func.func @transform_1(%arg0: i32) -> (i32, i32) {
    %c0_i32 = arith.constant 0 : i32
    %c0_i32_0 = arith.constant 0 : i32
    return %arg0, %c0_i32 : i32, i32
  }
}

</mosaic_0001>

<llo_original>
// kernel: tpu_custom_call.1
$region0: #{tpu_custom_call.1}
  #allocation0 [shape = 'u32[]', space=smem, size = 0x4, offset = 0x4, fixed_abs, tag = 'smem constant byte address 0x4 - core index']
  #allocation1 [shape = 'u32[144,128]{1,0:T(1,128)}', space=vmem, size = 0x12000, scoped, tag = 'internal scratch']
  %s0 = inlined_call_operand.hbm [shape: f32[2,1024], index: 0, kind: input, shape index: {}]
  %s1 = inlined_call_operand.hbm [shape: f32[2,1024], index: 1, kind: output, shape index: {}]
  %s2 = sld [smem:[#allocation0]]
  $region18: #{tpu_custom_call.1} parent=0
    _
  %s4 = ssub.s32 1, %s2
  %s5 = scalar_select 0, %s4, %s2
  $region1: #{tpu_custom_call.1} parent=0
    #allocation2 [shape = 'u8[8192]{0}', space=vmem, size = 0x2000, scoped, tag = 'input window, operand 0, single buffered']
    #allocation3 [shape = 's32[1]{0}', space=sflag, size = 0x4, scoped, tag = 'scoped memory for tpu_custom_call.1']
    #allocation4 [shape = 's32[1]{0}', space=sflag, size = 0x4, scoped, tag = 'scoped memory for tpu_custom_call.1']
    #allocation5 [shape = 'u8[8192]{0}', space=vmem, size = 0x2000, scoped, tag = 'output window, operand 0, single buffered']
    %6 = vsyncpa [#allocation3], 0
    %7 = vsyncpa [#allocation4], 0
    // Predicated region
    $region2: #{tpu_custom_call.1} parent=1 // pred_check
      _
    $region3: #{tpu_custom_call.1} parent=1 // pred_check_branch
      %9 = sbr.rel (0) target = $region5
    $region4: #{tpu_custom_call.1} parent=1 // pred_region
      %s11 = ssub.s32 256, 256
      %12 = vsyncadd [#allocation3], %s11
      %s14 = sshll.u32 [#allocation2], 4
      %s15 = int_to_ptr.vmem [resolvable:$true] %s14
      %17 = dma.hbm_to_vmem [thread:$0]  %s0, 256, %s15, [#allocation3]
    $region5: #{tpu_custom_call.1} parent=1 // pred_fallthru
      _
    // Predicated region
    $region6: #{tpu_custom_call.1} parent=1 // pred_check
      _
    $region7: #{tpu_custom_call.1} parent=1 // pred_check_branch
      %19 = sbr.rel (0) target = $region9
    $region8: #{tpu_custom_call.1} parent=1 // pred_region
      %20 = dma.done [#allocation3], 256
    $region9: #{tpu_custom_call.1} parent=1 // pred_fallthru
      _
    %v21 = vld [vmem:[#allocation2] sm:$0xff]
    %v22 = vld [vmem:[#allocation2 + $0x8] sm:$0xff]
    %v23 = vmul.f32 %v21, 0.5
    %v24 = vmul.f32 %v22, 0.5
    %25 = vst [vmem:[#allocation5] sm:$0xff] %v23
    %26 = vst [vmem:[#allocation5 + $0x8] sm:$0xff] %v24
    // Predicated region
    $region10: #{tpu_custom_call.1} parent=1 // pred_check
      _
    $region11: #{tpu_custom_call.1} parent=1 // pred_check_branch
      %28 = sbr.rel (0) target = $region13
    $region12: #{tpu_custom_call.1} parent=1 // pred_region
      %s30 = ssub.s32 256, 256
      %31 = vsyncadd [#allocation4], %s30
      %s33 = sshll.u32 [#allocation5], 4
      %s34 = int_to_ptr.vmem [resolvable:$true] %s33
      %36 = dma.vmem_to_hbm [thread:$0]  %s34, 256, %s1, [#allocation4]
    $region13: #{tpu_custom_call.1} parent=1 // pred_fallthru
      _
    // Predicated region
    $region14: #{tpu_custom_call.1} parent=1 // pred_check
      _
    $region15: #{tpu_custom_call.1} parent=1 // pred_check_branch
      %38 = sbr.rel (0) target = $region17
    $region16: #{tpu_custom_call.1} parent=1 // pred_region
      %39 = dma.done [#allocation4], 256
    $region17: #{tpu_custom_call.1} parent=1 // pred_fallthru
      _
    %40 = vsyncpa [#allocation3], 1
    %41 = vsyncpa [#allocation4], 1

</llo_original>
